<compile_context>
chip_gen: v5e
topology: v5e:2x2
jax: 0.10.0
libtpu: 0.0.40
codegen_flags: <defaults>
</compile_context>

<pallas_src>
import functools

import jax
import jax.numpy as jnp
from jax.experimental import pallas as pl
from jax.experimental.pallas import tpu as pltpu


def _round_up(x, m):
    return (x + m - 1) // m * m


def _cdiv(a, b):
    return (a + b - 1) // b


def _vmem_capacity_bytes():
    try:
        return int(pltpu.get_tpu_info().vmem_capacity_bytes)
    except Exception:
        return 64 * 1024 * 1024  # conservative fallback: v7x per-TC VMEM


def _gelu(h):
    # Custom GELU exactly as in the PyTorch module (note: no sqrt(2/pi)).
    return 0.5 * h * (1.0 + jnp.tanh(h * (1.0 + 0.044715 * h * h)))


def _pick_tf(F, max_tf):
    """Hidden-dim tile: an MXU-friendly divisor of F, never exceeding max_tf."""
    if F <= max_tf:
        return F
    for step in (256, 128):
        start = max_tf - max_tf % step
        for cand in range(start, 0, -step):
            if F % cand == 0:
                return cand
    # Largest divisor of F not exceeding max_tf (always terminates: 1 | F).
    for cand in range(min(max_tf, F), 0, -1):
        if F % cand == 0:
            return cand
    return F


# ----------------------------- kernels ------------------------------------


def _ffn_resident_kernel(x_ref, w1_ref, b1_ref, w2_ref, b2_ref, o_ref):
    # Weights resident in VMEM across the whole grid; one row tile per step.
    h = jnp.dot(x_ref[...], w1_ref[...], preferred_element_type=jnp.float32)
    h = h + b1_ref[...].astype(jnp.float32)
    g = _gelu(h)
    # TODO(synk): Dropout is identity in eval mode; training-mode dropout
    #             (pltpu.prng_random_bits mask) not implemented here.
    y = jnp.dot(g.astype(w2_ref.dtype), w2_ref[...],
                preferred_element_type=jnp.float32)
    o_ref[...] = (y + b2_ref[...].astype(jnp.float32)).astype(o_ref.dtype)


def _ffn_tiled_kernel(x_ref, w1_ref, b1_ref, w2_ref, b2_ref, o_ref, acc_ref):
    # Reduction over the hidden (F) axis with an f32 accumulator scratch
    # (used when the output dtype is not f32).
    f = pl.program_id(1)
    h = jnp.dot(x_ref[...], w1_ref[...], preferred_element_type=jnp.float32)
    h = h + b1_ref[...].astype(jnp.float32)
    g = _gelu(h)
    partial = jnp.dot(g.astype(w2_ref.dtype), w2_ref[...],
                      preferred_element_type=jnp.float32)

    @pl.when(f == 0)
    def _():
        acc_ref[...] = partial          # first partial written directly

    @pl.when(f > 0)
    def _():
        acc_ref[...] += partial

    @pl.when(f == pl.num_programs(1) - 1)
    def _():
        o_ref[...] = (acc_ref[...]
                      + b2_ref[...].astype(jnp.float32)).astype(o_ref.dtype)


def _ffn_tiled_kernel_f32out(x_ref, w1_ref, b1_ref, w2_ref, b2_ref, o_ref):
    # f32 output: accumulate directly into the resident output block, so no
    # accumulator scratch is needed (saves tm*E_out*4 bytes of VMEM).
    f = pl.program_id(1)
    h = jnp.dot(x_ref[...], w1_ref[...], preferred_element_type=jnp.float32)
    h = h + b1_ref[...].astype(jnp.float32)
    g = _gelu(h)
    partial = jnp.dot(g.astype(w2_ref.dtype), w2_ref[...],
                      preferred_element_type=jnp.float32)

    @pl.when(f == 0)
    def _():
        o_ref[...] = partial

    @pl.when(f > 0)
    def _():
        o_ref[...] += partial

    @pl.when(f == pl.num_programs(1) - 1)
    def _():
        o_ref[...] += b2_ref[...].astype(jnp.float32)


# ----------------------------- wrapper -------------------------------------


@functools.partial(jax.jit, static_argnames=("tm", "tf", "matmul_dtype"))
def feed_forward(x, w1, b1, w2, b2, *, tm=None, tf=None, matmul_dtype=None):
    """FeedForward: Linear(E->F) -> GELU -> (Dropout=id) -> Linear(F->E).

    x: (B, T, E); w1: (E, F); b1: (F,); w2: (F, E); b2: (E,).
    matmul_dtype: optional MXU operand dtype (e.g. jnp.bfloat16) for the two
      dots; accumulation stays f32.  Default None keeps the module's dtype
      (exact f32 numerics).
    """
    B, T, E = x.shape
    F = w1.shape[1]
    M = B * T
    out_dtype = x.dtype

    if tf is not None:
        if F % tf != 0:
            raise ValueError(f"tf={tf} must evenly divide F={F}")
        if tf != F and tf % 128 != 0:
            raise ValueError("tf must be a multiple of 128 (or equal F)")

    x2d = x.reshape(M, E)
    if matmul_dtype is not None:
        x2d = x2d.astype(matmul_dtype)
        w1 = w1.astype(matmul_dtype)
        w2 = w2.astype(matmul_dtype)

    # Lane-dense output: pad the output feature dim to a multiple of 128 so
    # output stores are unmasked.  Skipped in the common E % 128 == 0 case.
    # TODO(synk): in a real model, pad W2/b2 once at parameter-setup time
    #             instead of on every forward call.
    E_out = _round_up(E, 128)
    if E_out != E:
        w2 = jnp.pad(w2, ((0, 0), (0, E_out - E)))
        b2 = jnp.pad(b2, ((0, E_out - E),))

    b1_2d = b1.reshape(1, F)
    b2_2d = b2.reshape(1, E_out)

    in_isz = x2d.dtype.itemsize
    w_isz = w1.dtype.itemsize
    b_isz = b1_2d.dtype.itemsize
    out_isz = jnp.dtype(out_dtype).itemsize
    pack = 8 if in_isz >= 4 else 16          # f32 vs bf16 sublane packing

    cap = _vmem_capacity_bytes()
    budget = int(cap * 0.75)                 # scoped-VMEM budget we size to

    # Row tile: the arithmetic-intensity knob.  Big by default, clamped to M,
    # and split so there are >= 2 row tiles (v7x megacore) for non-tiny M.
    if tm is None:
        tm = 512
    tm = max(pack, min(_round_up(tm, pack), _round_up(M, pack)))
    if M >= 512 and _cdiv(M, tm) < 2:
        tm = max(pack, _round_up(_cdiv(M, 2), pack))

    def resident_vmem(tm_):
        weights = (E * F + F * E_out) * w_isz + (F + E_out) * b_isz
        streams = 2 * tm_ * E * in_isz + 2 * tm_ * E_out * out_isz
        interm = tm_ * F * 4 + tm_ * E_out * 4      # GELU + f32 dot results
        return weights + streams + interm

    def tiled_vmem(tm_, tf_):
        return (2 * tm_ * E * in_isz                       # x tile
                + 2 * (E * tf_ + tf_ * E_out) * w_isz      # W1/W2 tiles
                + 2 * (tf_ + E_out) * b_isz                # bias tiles
                + 2 * tm_ * E_out * out_isz                # output tile
                + tm_ * E_out * 4                          # f32 accumulator
                + 2 * tm_ * tf_ * 4)                       # GELU intermediates

    flops = 2 * M * F * (E + E_out)
    trans = M * F
    io_bytes = x2d.size * in_isz + M * E_out * out_isz
    weight_bytes = (w1.size * w_isz + w2.size * w_isz
                    + b1_2d.size * b_isz + b2_2d.size * b_isz)

    use_resident = (tf is None) and (resident_vmem(tm) <= budget)

    if use_resident:
        n_row_tiles = _cdiv(M, tm)
        out2d = pl.pallas_call(
            _ffn_resident_kernel,
            out_shape=jax.ShapeDtypeStruct((M, E_out), out_dtype),
            grid_spec=pltpu.PrefetchScalarGridSpec(
                num_scalar_prefetch=0,
                grid=(n_row_tiles,),
                in_specs=[
                    pl.BlockSpec((tm, E), lambda i: (i, 0)),       # x rows
                    pl.BlockSpec((E, F), lambda i: (0, 0)),        # W1 resident
                    pl.BlockSpec((1, F), lambda i: (0, 0)),        # b1
                    pl.BlockSpec((F, E_out), lambda i: (0, 0)),    # W2 resident
                    pl.BlockSpec((1, E_out), lambda i: (0, 0)),    # b2
                ],
                out_specs=pl.BlockSpec((tm, E_out), lambda i: (i, 0)),
            ),
            compiler_params=pltpu.CompilerParams(
                dimension_semantics=("parallel",),
                vmem_limit_bytes=budget),
            cost_estimate=pl.CostEstimate(
                flops=flops, transcendentals=trans,
                bytes_accessed=io_bytes + weight_bytes),
        )(x2d, w1, b1_2d, w2, b2_2d)
    else:
        if tf is None:
            tf = _pick_tf(F, max_tf=512)
            if tf % 128 != 0 and tf != F:
                tf = F        # keep the (8,128) lane constraint (rare F)
        # Shrink tf first (granularity only), then tm, to fit the VMEM budget.
        while tiled_vmem(tm, tf) > budget:
            if tf > 128 and tf % 256 == 0 and F % (tf // 2) == 0:
                tf //= 2
            elif tm > pack:
                tm = max(pack, _round_up(tm // 2, pack))
            else:
                break

        n_row_tiles = _cdiv(M, tm)
        if out_dtype == jnp.float32:
            kernel = _ffn_tiled_kernel_f32out
            scratch = []
        else:
            kernel = _ffn_tiled_kernel
            scratch = [pltpu.VMEM((tm, E_out), jnp.float32)]

        out2d = pl.pallas_call(
            kernel,
            out_shape=jax.ShapeDtypeStruct((M, E_out), out_dtype),
            grid_spec=pltpu.PrefetchScalarGridSpec(
                num_scalar_prefetch=0,
                grid=(n_row_tiles, F // tf),
                in_specs=[
                    pl.BlockSpec((tm, E), lambda i, f: (i, 0)),      # x rows
                    pl.BlockSpec((E, tf), lambda i, f: (0, f)),      # W1 tile
                    pl.BlockSpec((1, tf), lambda i, f: (0, f)),      # b1 tile
                    pl.BlockSpec((tf, E_out), lambda i, f: (f, 0)),  # W2 tile
                    pl.BlockSpec((1, E_out), lambda i, f: (0, 0)),   # b2
                ],
                out_specs=pl.BlockSpec((tm, E_out), lambda i, f: (i, 0)),
                scratch_shapes=scratch,
            ),
            compiler_params=pltpu.CompilerParams(
                dimension_semantics=("parallel", "arbitrary"),
                vmem_limit_bytes=budget),
            cost_estimate=pl.CostEstimate(
                flops=flops, transcendentals=trans,
                # W1/W2/biases are re-streamed once per row tile.
                bytes_accessed=io_bytes + n_row_tiles * weight_bytes),
        )(x2d, w1, b1_2d, w2, b2_2d)

    return out2d[:, :E].reshape(B, T, E)


def _reference(x, w1, b1, w2, b2):
    h = jnp.einsum("bte,ef->btf", x, w1) + b1
    g = 0.5 * h * (1.0 + jnp.tanh(h * (1.0 + 0.044715 * h * h)))
    return jnp.einsum("btf,fe->bte", g, w2) + b2


if __name__ == "__main__":
    # Small config consistent with the module: embed_dim=32, ff_dim=64.
    B, T, E, F = 2, 8, 32, 64

    key = jax.random.PRNGKey(0)
    kx, kw1, kb1, kw2, kb2 = jax.random.split(key, 5)

    x = jax.random.normal(kx, (B, T, E), dtype=jnp.float32)
    # SimpleLinear_v1-style params: weight (in, out) + bias (out,).
    w1 = jax.random.normal(kw1, (E, F), dtype=jnp.float32) * (1.0 / E ** 0.5)
    b1 = jax.random.normal(kb1, (F,), dtype=jnp.float32) * 0.01
    w2 = jax.random.normal(kw2, (F, E), dtype=jnp.float32) * (1.0 / F ** 0.5)
    b2 = jax.random.normal(kb2, (E,), dtype=jnp.float32) * 0.01

    ref = _reference(x, w1, b1, w2, b2)

    # 1) Resident-weights fast path (default config at these sizes).
    out = jax.block_until_ready(feed_forward(x, w1, b1, w2, b2))
    assert out.shape == (B, T, E)
    assert jnp.allclose(out, ref, atol=1e-4, rtol=1e-4), "resident path mismatch"

    # 2) Tiled (F-reduction) path, forced via explicit tiles; exercises the
    #    f32 accumulate-into-output kernel with multiple row tiles.
    out_t = jax.block_until_ready(feed_forward(x, w1, b1, w2, b2, tm=8, tf=F))
    assert jnp.allclose(out_t, ref, atol=1e-4, rtol=1e-4), "tiled path mismatch"

    # 3) bf16 inputs (exercises the accumulator-scratch kernel; f32 accum).
    out_b = jax.block_until_ready(feed_forward(
        x.astype(jnp.bfloat16), w1.astype(jnp.bfloat16), b1.astype(jnp.bfloat16),
        w2.astype(jnp.bfloat16), b2.astype(jnp.bfloat16), tm=8, tf=F))
    assert jnp.allclose(out_b.astype(jnp.float32), ref, atol=1e-1, rtol=1e-1), \
        "bf16 tiled path mismatch"

    print("KERNEL_OK")
</pallas_src>

<mosaic_0001>
module attributes {stable_mosaic.version = 11 : i64} {
  func.func @_ffn_resident_kernel(%arg0: i32, %arg1: memref<16x32xf32, #tpu.memory_space<vmem>>, %arg2: memref<32x64xf32, #tpu.memory_space<vmem>>, %arg3: memref<1x64xf32, #tpu.memory_space<vmem>>, %arg4: memref<64x128xf32, #tpu.memory_space<vmem>>, %arg5: memref<1x128xf32, #tpu.memory_space<vmem>>, %arg6: memref<16x128xf32, #tpu.memory_space<vmem>>) attributes {dimension_semantics = [#tpu.dimension_semantics<parallel>], iteration_bounds = array<i64: 1>, scalar_prefetch = 0 : i64, scratch_operands = 0 : i64, tpu.core_type = #tpu.core_type<tc>, window_params = [{transform_indices = @transform_0, window_bounds = array<i64: 16, 32>}, {pipeline_mode = #tpu.pipeline_mode<synchronous>, transform_indices = @transform_1, window_bounds = array<i64: 32, 64>}, {pipeline_mode = #tpu.pipeline_mode<synchronous>, transform_indices = @transform_2, window_bounds = array<i64: 1, 64>}, {pipeline_mode = #tpu.pipeline_mode<synchronous>, transform_indices = @transform_3, window_bounds = array<i64: 64, 128>}, {pipeline_mode = #tpu.pipeline_mode<synchronous>, transform_indices = @transform_4, window_bounds = array<i64: 1, 128>}, {transform_indices = @transform_5, window_bounds = array<i64: 16, 128>}]} {
    %c0 = arith.constant 0 : index
    %c0_0 = arith.constant 0 : index
    %0 = vector.load %arg1[%c0, %c0_0] : memref<16x32xf32, #tpu.memory_space<vmem>>, vector<16x32xf32>
    %c0_1 = arith.constant 0 : index
    %c0_2 = arith.constant 0 : index
    %1 = vector.load %arg2[%c0_1, %c0_2] : memref<32x64xf32, #tpu.memory_space<vmem>>, vector<32x64xf32>
    %cst = arith.constant dense<0.000000e+00> : vector<16x64xf32>
    %2 = tpu.matmul %0, %1, %cst {dimension_numbers = #tpu.dot_dimension_numbers<[1], [0], [0], [1], [0, 0, 1, 1], [], []>} : vector<16x32xf32>, vector<32x64xf32>, vector<16x64xf32> -> vector<16x64xf32>
    %c0_3 = arith.constant 0 : index
    %c0_4 = arith.constant 0 : index
    %3 = vector.load %arg3[%c0_3, %c0_4] : memref<1x64xf32, #tpu.memory_space<vmem>>, vector<1x64xf32>
    %4 = vector.broadcast %3 : vector<1x64xf32> to vector<16x64xf32>
    %5 = arith.addf %2, %4 : vector<16x64xf32>
    %cst_5 = arith.constant 5.000000e-01 : f32
    %6 = vector.broadcast %cst_5 : f32 to vector<16x64xf32>
    %7 = arith.mulf %6, %5 : vector<16x64xf32>
    %cst_6 = arith.constant 4.471500e-02 : f32
    %8 = vector.broadcast %cst_6 : f32 to vector<16x64xf32>
    %9 = arith.mulf %8, %5 : vector<16x64xf32>
    %10 = arith.mulf %9, %5 : vector<16x64xf32>
    %cst_7 = arith.constant 1.000000e+00 : f32
    %11 = vector.broadcast %cst_7 : f32 to vector<16x64xf32>
    %12 = arith.addf %11, %10 : vector<16x64xf32>
    %13 = arith.mulf %5, %12 : vector<16x64xf32>
    %14 = math.tanh %13 : vector<16x64xf32>
    %cst_8 = arith.constant 1.000000e+00 : f32
    %15 = vector.broadcast %cst_8 : f32 to vector<16x64xf32>
    %16 = arith.addf %15, %14 : vector<16x64xf32>
    %17 = arith.mulf %7, %16 : vector<16x64xf32>
    %c0_9 = arith.constant 0 : index
    %c0_10 = arith.constant 0 : index
    %18 = vector.load %arg4[%c0_9, %c0_10] : memref<64x128xf32, #tpu.memory_space<vmem>>, vector<64x128xf32>
    %cst_11 = arith.constant dense<0.000000e+00> : vector<16x128xf32>
    %19 = tpu.matmul %17, %18, %cst_11 {dimension_numbers = #tpu.dot_dimension_numbers<[1], [0], [0], [1], [0, 0, 1, 1], [], []>} : vector<16x64xf32>, vector<64x128xf32>, vector<16x128xf32> -> vector<16x128xf32>
    %c0_12 = arith.constant 0 : index
    %c0_13 = arith.constant 0 : index
    %20 = vector.load %arg5[%c0_12, %c0_13] : memref<1x128xf32, #tpu.memory_space<vmem>>, vector<1x128xf32>
    %21 = vector.broadcast %20 : vector<1x128xf32> to vector<16x128xf32>
    %22 = arith.addf %19, %21 : vector<16x128xf32>
    %c0_14 = arith.constant 0 : index
    %c0_15 = arith.constant 0 : index
    %23 = vector.load %arg6[%c0_14, %c0_15] : memref<16x128xf32, #tpu.memory_space<vmem>>, vector<16x128xf32>
    tpu.vector_store %arg6[%c0_14, %c0_15], %22 {strides = array<i32>} : memref<16x128xf32, #tpu.memory_space<vmem>>, vector<16x128xf32>,
    return
  }
  func.func @transform_0(%arg0: i32) -> (i32, i32) {
    %c0_i32 = arith.constant 0 : i32
    %c0_i32_0 = arith.constant 0 : i32
    return %arg0, %c0_i32 : i32, i32
  }
  func.func @transform_1(%arg0: i32) -> (i32, i32) {
    %c0_i32 = arith.constant 0 : i32
    %c0_i32_0 = arith.constant 0 : i32
    %c0_i32_1 = arith.constant 0 : i32
    return %c0_i32, %c0_i32_0 : i32, i32
  }
  func.func @transform_2(%arg0: i32) -> (i32, i32) {
    %c0_i32 = arith.constant 0 : i32
    %c0_i32_0 = arith.constant 0 : i32
    %c0_i32_1 = arith.constant 0 : i32
    return %c0_i32, %c0_i32_0 : i32, i32
  }
  func.func @transform_3(%arg0: i32) -> (i32, i32) {
    %c0_i32 = arith.constant 0 : i32
    %c0_i32_0 = arith.constant 0 : i32
    %c0_i32_1 = arith.constant 0 : i32
    return %c0_i32, %c0_i32_0 : i32, i32
  }
  func.func @transform_4(%arg0: i32) -> (i32, i32) {
    %c0_i32 = arith.constant 0 : i32
    %c0_i32_0 = arith.constant 0 : i32
    %c0_i32_1 = arith.constant 0 : i32
    return %c0_i32, %c0_i32_0 : i32, i32
  }
  func.func @transform_5(%arg0: i32) -> (i32, i32) {
    %c0_i32 = arith.constant 0 : i32
    %c0_i32_0 = arith.constant 0 : i32
    return %arg0, %c0_i32 : i32, i32
  }
}

</mosaic_0001>

<llo_original>
// kernel: feed_forward.1
$region0: #{feed_forward.1}
  #allocation0 [shape = 'u32[]', space=smem, size = 0x4, offset = 0x4, fixed_abs, tag = 'smem constant byte address 0x4 - core index']
  #allocation1 [shape = 'u32[72,128]{1,0:T(1,128)}', space=vmem, size = 0x9000, scoped, tag = 'internal scratch']
  %s0 = inlined_call_operand.vmem [shape: f32[16,32], index: 0, kind: input, shape index: {}]
  %s1 = inlined_call_operand.vmem [shape: f32[32,64], index: 1, kind: input, shape index: {}]
  %s2 = inlined_call_operand.vmem [shape: f32[1,64], index: 2, kind: input, shape index: {}]
  %s3 = inlined_call_operand.vmem [shape: f32[64,128], index: 3, kind: input, shape index: {}]
  %s4 = inlined_call_operand.vmem [shape: f32[1,128], index: 4, kind: input, shape index: {}]
  %s5 = inlined_call_operand.vmem [shape: f32[16,128], index: 5, kind: output, shape index: {}]
  %s6 = sld [smem:[#allocation0]]
  $region30: #{feed_forward.1} parent=0
    _
  %s8 = ssub.s32 1, %s6
  %s9 = scalar_select 0, %s8, %s6
  // Predicated region
  $region2: #{feed_forward.1} parent=0 // pred_check
    _
  $region3: #{feed_forward.1} parent=0 // pred_check_branch
    %11 = sbr.rel (0) target = $region5
  $region4: #{feed_forward.1} parent=0 // pred_region
    _
  $region5: #{feed_forward.1} parent=0 // pred_fallthru
    _
  // Predicated region
  $region6: #{feed_forward.1} parent=0 // pred_check
    _
  $region7: #{feed_forward.1} parent=0 // pred_check_branch
    %13 = sbr.rel (0) target = $region9
  $region8: #{feed_forward.1} parent=0 // pred_region
    _
  $region9: #{feed_forward.1} parent=0 // pred_fallthru
    _
  // Predicated region
  $region10: #{feed_forward.1} parent=0 // pred_check
    _
  $region11: #{feed_forward.1} parent=0 // pred_check_branch
    %15 = sbr.rel (0) target = $region13
  $region12: #{feed_forward.1} parent=0 // pred_region
    _
  $region13: #{feed_forward.1} parent=0 // pred_fallthru
    _
  // Predicated region
  $region14: #{feed_forward.1} parent=0 // pred_check
    _
  $region15: #{feed_forward.1} parent=0 // pred_check_branch
    %17 = sbr.rel (0) target = $region17
  $region16: #{feed_forward.1} parent=0 // pred_region
    _
  $region17: #{feed_forward.1} parent=0 // pred_fallthru
    _
  // Predicated region
  $region18: #{feed_forward.1} parent=0 // pred_check
    _
  $region19: #{feed_forward.1} parent=0 // pred_check_branch
    %19 = sbr.rel (0) target = $region21
  $region20: #{feed_forward.1} parent=0 // pred_region
    _
  $region21: #{feed_forward.1} parent=0 // pred_fallthru
    _
  %v20 = vld [vmem:[%s0] sm:$0xff]
  %v21 = vld [vmem:[%s0 + $0x8] sm:$0xff]
  %v22 = vld [vmem:[%s1] sm:$0xff]
  %v23 = vld [vmem:[%s1 + $0x8] sm:$0xff]
  %v24 = vld [vmem:[%s1 + $0x10] sm:$0xff]
  %v25 = vld [vmem:[%s1 + $0x18] sm:$0xff]
  %v26 = vld [vmem:[%s2] sm:$0x1]
  %v28 = vperm.slane %v26, 0
  %vm30 = vcmask 261120
  %v32 = vsel %vm30, %v20, 0
  %v35 = vsel %vm30, %v21, 0
  %37 = vmatpush.msra.mxu0 0.0
  %38 = vmatpush.msra.mxu0 0.0
  %39 = vmatpush.msra.mxu0 0.0
  %40 = vmatpush.msra.mxu0 0.0
  %41 = vmatpush.msra.mxu0 0.0
  %42 = vmatpush.msra.mxu0 0.0
  %43 = vmatpush.msra.mxu0 0.0
  %44 = vmatpush.msra.mxu0 0.0
  %45 = vmatpush.msra.mxu0 0.0
  %46 = vmatpush.msra.mxu0 0.0
  %47 = vmatpush.msra.mxu0 0.0
  %48 = vmatpush.msra.mxu0 0.0
  %49 = vmatpush.msra.mxu0 %v25
  %50 = vmatpush.msra.mxu0 %v24
  %51 = vmatpush.msra.mxu0 %v23
  %52 = vmatpush.msra.mxu0 %v22
  %53 = vmatmul.f32.gmra.mxu0 %v32
  %v54 = vpop.f32.mrf.mxu0
  %v55 = vadd.f32 %v28, %v54
  %56 = vmatmul.f32.gmra.mxu0 %v35
  %v57 = vpop.f32.mrf.mxu0
  %v58 = vadd.f32 %v28, %v57
  %59 = vdwg.mxu0
  %v60 = vmul.f32 %v55, 0.5
  %v61 = vmul.f32 %v58, 0.5
  %v62 = vmul.f32 %v55, 0.044715
  %v63 = vmul.f32 %v58, 0.044715
  %v64 = vmul.f32 %v62, %v55
  %v65 = vmul.f32 %v63, %v58
  %v66 = vadd.f32 %v64, 1.0
  %v67 = vadd.f32 %v65, 1.0
  %v68 = vmul.f32 %v55, %v66
  %v69 = vmul.f32 %v58, %v67
  %v70 = vtanh.pop %v68
  %v71 = vtanh.pop %v69
  %v72 = vadd.f32 %v70, 1.0
  %v73 = vadd.f32 %v71, 1.0
  %v74 = vmul.f32 %v60, %v72
  %v75 = vmul.f32 %v61, %v73
  %v76 = vld [vmem:[%s3] sm:$0xff]
  %v77 = vld [vmem:[%s3 + $0x8] sm:$0xff]
  %v78 = vld [vmem:[%s3 + $0x10] sm:$0xff]
  %v79 = vld [vmem:[%s3 + $0x18] sm:$0xff]
  %v80 = vld [vmem:[%s3 + $0x20] sm:$0xff]
  %v81 = vld [vmem:[%s3 + $0x28] sm:$0xff]
  %v82 = vld [vmem:[%s3 + $0x30] sm:$0xff]
  %v83 = vld [vmem:[%s3 + $0x38] sm:$0xff]
  %v84 = vld [vmem:[%s4] sm:$0x1]
  %v86 = vperm.slane %v84, 0
  %vm88 = vcmask 523264
  %v90 = vsel %vm88, %v74, 0
  %v93 = vsel %vm88, %v75, 0
  %95 = vmatpush.msra.mxu0 0.0
  %96 = vmatpush.msra.mxu0 0.0
  %97 = vmatpush.msra.mxu0 0.0
  %98 = vmatpush.msra.mxu0 0.0
  %99 = vmatpush.msra.mxu0 0.0
  %100 = vmatpush.msra.mxu0 0.0
  %101 = vmatpush.msra.mxu0 0.0
  %102 = vmatpush.msra.mxu0 0.0
  %103 = vmatpush.msra.mxu0 %v83
  %104 = vmatpush.msra.mxu0 %v82
  %105 = vmatpush.msra.mxu0 %v81
  %106 = vmatpush.msra.mxu0 %v80
  %107 = vmatpush.msra.mxu0 %v79
  %108 = vmatpush.msra.mxu0 %v78
  %109 = vmatpush.msra.mxu0 %v77
  %110 = vmatpush.msra.mxu0 %v76
  %111 = vmatmul.f32.gmra.mxu0 %v90
  %v112 = vpop.f32.mrf.mxu0
  %v113 = vadd.f32 %v86, %v112
  %114 = vmatmul.f32.gmra.mxu0 %v93
  %v115 = vpop.f32.mrf.mxu0
  %v116 = vadd.f32 %v86, %v115
  %117 = vdwg.mxu0
  %118 = vst [vmem:[%s5] sm:$0xff] %v113
  %119 = vst [vmem:[%s5 + $0x8] sm:$0xff] %v116
  // Predicated region
  $region22: #{feed_forward.1} parent=0 // pred_check
    _
  $region23: #{feed_forward.1} parent=0 // pred_check_branch
    %121 = sbr.rel (0) target = $region25
  $region24: #{feed_forward.1} parent=0 // pred_region
    _
  $region25: #{feed_forward.1} parent=0 // pred_fallthru
    _
  // Predicated region
  $region26: #{feed_forward.1} parent=0 // pred_check
    _
  $region27: #{feed_forward.1} parent=0 // pred_check_branch
    %123 = sbr.rel (0) target = $region29
  $region28: #{feed_forward.1} parent=0 // pred_region
    _
  $region29: #{feed_forward.1} parent=0 // pred_fallthru
    _

</llo_original>
